<compile_context>
chip_gen: v6e
topology: v6e:2x2x1
jax: 0.10.0
libtpu: 0.0.40
codegen_flags: <defaults>
</compile_context>

<pallas_src>
import functools

import jax
import jax.numpy as jnp
from jax import lax
from jax.experimental import pallas as pl
from jax.experimental.pallas import tpu as pltpu

_EPS = 1e-12


def _round_up(x, m):
    return (x + m - 1) // m * m


def _vmem_capacity_bytes(default=64 << 20):
    """Physical VMEM of the local TPU generation; conservative fallback (v7x-sized)."""
    try:
        info = pltpu.get_tpu_info()
        cap = getattr(info, "vmem_capacity_bytes", None)
        return int(cap) if cap else default
    except Exception:
        return default


def _choose_p_tile(bb, cc, itemsize, p_true, vmem_cap):
    """Largest 128-multiple lane tile whose working set fits a generation-aware budget."""
    budget = max(16 << 20, vmem_cap // 3)               # ~21 MiB on v7x, ~42 MiB on v5e/v6e
    max_lanes = 8192 if vmem_cap >= (96 << 20) else 4096
    min_lanes = 256 if itemsize < 4 else 128            # keep per-(b,c) DMA rows >= 512 B
    # Bytes of VMEM per lane of P: 3 double-buffered feature tiles + double-buffered
    # (3, tp) sum_map tile + six sublane-padded (1, tp) accumulators.
    per_lane = 3 * 2 * bb * cc * itemsize + 2 * 3 * 4 + 6 * 8 * 4
    tp = (budget // per_lane) // 128 * 128
    tp = max(min_lanes, min(int(tp), max_lanes))
    tp = min(tp, _round_up(p_true, 128))                 # never wider than (padded) P
    return int(max(128, tp))


def _square_loss_kernel(y_ref, sm_ref, h0_ref, h1_ref, h2_ref, out_ref,
                        a0i, a0c, a1i, a1c, a2i, a2c, *, bb, p_true, p_tile):
    """One P-tile grid step (all three classes).

    y_ref  : (3, cc, 1)    L2-normalised sampled class vectors (f32, resident)
    sm_ref : (3, p_tile)   precomputed sum_j map_k[j, p] tile (f32)
    h*_ref : (bb, cc, TP)  class-k feature tile (HBM dtype; cast to f32 here)
    out_ref: (3,)          SMEM, raw per-class loss means (whole array, resident)
    a*i/a*c: (1, p_tile)   VMEM per-lane accumulators: sum_i inner^2 / (sum_i inner)*sum_map
    """
    j = pl.program_id(0)
    nj = pl.num_programs(0)
    acc_ii = (a0i, a1i, a2i)
    acc_cr = (a0c, a1c, a2c)

    @pl.when(j == 0)
    def _():
        for r in acc_ii + acc_cr:
            r[...] = jnp.zeros_like(r)

    # Ragged-tail mask: the last tile may extend past p_true (no wrapper-side padding).
    lane = lax.broadcasted_iota(jnp.int32, (1, p_tile), 1)
    valid = (j * p_tile + lane) < p_true                          # (1, p_tile)

    y_all = y_ref[...].astype(jnp.float32)                        # (3, cc, 1)
    sm_all = jnp.where(valid, sm_ref[...], 0.0)                   # (3, p_tile), tail zeroed

    for k, h_ref in enumerate((h0_ref, h1_ref, h2_ref)):
        h = h_ref[...].astype(jnp.float32)                        # (bb, cc, TP)
        yk = y_all[k]                                             # (cc, 1) -> lane bcast
        # Fused normalize + cosine: inner = (h . y_k) / max(||h||_2, eps)
        dot = jnp.sum(h * yk, axis=1)                             # (bb, TP)
        nrm2 = jnp.sum(h * h, axis=1)                             # (bb, TP)
        inv = lax.rsqrt(jnp.maximum(nrm2, _EPS * _EPS))           # 1 / max(||h||, eps), EUP
        inner = jnp.where(valid, dot * inv, 0.0)                  # (bb, TP), 0 on tail
        # Per-lane partial sums only; cross-lane reduce deferred to the epilogue.
        acc_ii[k][...] += jnp.sum(inner * inner, axis=0, keepdims=True)
        acc_cr[k][...] += jnp.sum(inner, axis=0, keepdims=True) * sm_all[k:k + 1, :]

    @pl.when(j == nj - 1)
    def _():
        denom = float(bb * bb * p_true)
        for k in range(3):
            s_ii = jnp.sum(acc_ii[k][...])
            s_cr = jnp.sum(acc_cr[k][...])
            # mean_{i,j,p}(inner[i,p] - map[j,p])^2
            #   = (bb*S_ii - 2*S_cross + bb*S_mm) / (bb^2 * P), with S_mm == bb*P -> "+1.0"
            out_ref[k] = (float(bb) * s_ii - 2.0 * s_cr) / denom + 1.0


def _square_loss_pallas(h0, h1, h2, y_norm, sum_map, *, p_true, p_tile, vmem_cap):
    """h0/h1/h2: (bb, cc, P), y_norm: (3, cc, 1) f32, sum_map: (3, P) f32 -> (3,) f32."""
    bb, cc, _ = h0.shape
    itemsize = jnp.dtype(h0.dtype).itemsize
    n_p = -(-p_true // p_tile)

    kernel = functools.partial(_square_loss_kernel, bb=bb, p_true=p_true, p_tile=p_tile)

    grid_spec = pltpu.PrefetchScalarGridSpec(
        num_scalar_prefetch=0,
        grid=(n_p,),
        in_specs=[
            pl.BlockSpec((3, cc, 1), lambda j: (0, 0, 0)),         # y vectors (tiny, resident)
            pl.BlockSpec((3, p_tile), lambda j: (0, j)),           # sum_map tile
            pl.BlockSpec((bb, cc, p_tile), lambda j: (0, 0, j)),   # class-0 feature tile
            pl.BlockSpec((bb, cc, p_tile), lambda j: (0, 0, j)),   # class-1 feature tile
            pl.BlockSpec((bb, cc, p_tile), lambda j: (0, 0, j)),   # class-2 feature tile
        ],
        out_specs=pl.BlockSpec(memory_space=pltpu.MemorySpace.SMEM),
        scratch_shapes=[pltpu.VMEM((1, p_tile), jnp.float32)] * 6,
    )

    # Working set: double-buffered inputs + sublane-padded accumulators + y vectors.
    working = (2 * (3 * bb * cc * p_tile * itemsize + 3 * p_tile * 4)
               + 6 * 8 * p_tile * 4
               + 2 * 3 * cc * 4)
    vmem_limit = max(32 << 20, min(2 * working + (8 << 20), int(0.9 * vmem_cap)))
    vmem_limit = int(max(vmem_limit, working + (4 << 20)))        # never clip below need

    return pl.pallas_call(
        kernel,
        out_shape=jax.ShapeDtypeStruct((3,), jnp.float32),
        grid_spec=grid_spec,
        compiler_params=pltpu.CompilerParams(
            dimension_semantics=("arbitrary",),
            vmem_limit_bytes=vmem_limit,
        ),
    )(y_norm, sum_map, h0, h1, h2)


def _pick_random_feature(h_k, targets1, k, key):
    """Plain-JAX glue for the data-dependent boolean-mask gather + torch.randint.

    Mimics: a = h_k.permute(0,2,3,1)[targets1 == k]; y = a[randint(len(a))]
    (zeros + errorflag if the class is absent), then F.normalize over channels.
    """
    b, c, h, w = h_k.shape
    feats = jnp.transpose(h_k, (0, 2, 3, 1)).reshape(-1, c)       # (b*h*w, c)
    mask = (targets1.reshape(-1) == k)
    count = jnp.sum(mask.astype(jnp.int32))
    errorflag = (count == 0)
    r = jax.random.randint(key, (), 0, jnp.maximum(count, 1))
    order = jnp.cumsum(mask.astype(jnp.int32)) - 1                # rank among masked
    sel = mask & (order == r)
    flat_idx = jnp.argmax(sel)
    vec = jnp.where(errorflag, jnp.zeros((c,), feats.dtype), feats[flat_idx])
    n = jnp.sqrt(jnp.sum(vec * vec))
    vec_n = vec / jnp.maximum(n, _EPS)                            # F.normalize
    return vec_n.astype(jnp.float32), errorflag


def square_loss(h_0, h_1, h_2, targets1, y, h_00, h_11, h_22, targets2, yy, *,
                key, p_tile=None, feature_dtype=jnp.bfloat16):
    """Forward pass of SquareLoss.  `y` and `yy` are unused (as in the reference)."""
    del y, yy
    bb, cc, hh, ww = h_00.shape
    k0, k1, k2 = jax.random.split(key, 3)
    y0, e0 = _pick_random_feature(h_0, targets1, 0, k0)
    y1, e1 = _pick_random_feature(h_1, targets1, 1, k1)
    y2, e2 = _pick_random_feature(h_2, targets1, 2, k2)
    y_norm = jnp.stack([y0, y1, y2], axis=0).reshape(3, cc, 1)

    p_true = hh * ww
    fd = jnp.dtype(h_00.dtype) if feature_dtype is None else jnp.dtype(feature_dtype)

    # reshape is a free bitcast (no HBM copy); the optional bf16 down-cast halves the
    # dominant HBM read of the kernel (in a real model it fuses into the feature producer).
    h0 = h_00.reshape(bb, cc, p_true).astype(fd)
    h1 = h_11.reshape(bb, cc, p_true).astype(fd)
    h2 = h_22.reshape(bb, cc, p_true).astype(fd)

    # Precompute sum_j map_k[j, p] = 2*count_j(t2[j,p]==k) - bb once (tiny (3, P) array);
    # the kernel never touches targets2.
    t2 = targets2.reshape(bb, p_true)
    counts = jnp.stack(
        [jnp.sum((t2 == k).astype(jnp.float32), axis=0) for k in range(3)], axis=0)
    sum_map = 2.0 * counts - float(bb)                            # (3, P)

    vmem_cap = _vmem_capacity_bytes()
    if p_tile is None:
        p_tile = _choose_p_tile(bb, cc, fd.itemsize, p_true, vmem_cap)
    p_tile = max(128, _round_up(int(p_tile), 128))

    raw = _square_loss_pallas(h0, h1, h2, y_norm, sum_map,
                              p_true=p_true, p_tile=p_tile, vmem_cap=vmem_cap)   # (3,)

    gate = 1.0 - jnp.stack([e0, e1, e2]).astype(jnp.float32)
    loss0 = raw[0] * gate[0]
    loss1 = raw[1] * gate[1]
    loss2 = raw[2] * gate[2]
    loss4 = (loss0 + loss1 + loss2) / 4.0
    return loss0, loss1, loss2, loss4


def _reference_square_loss(h00, h11, h22, targets2, y_stack, eflags):
    """Pure-JAX reference mirroring the PyTorch broadcast-mean semantics."""
    bb, cc, hh, ww = h00.shape

    def one(hm, k):
        h = hm.astype(jnp.float32)
        nrm = jnp.sqrt(jnp.sum(h * h, axis=1, keepdims=True))
        hn = h / jnp.maximum(nrm, _EPS)
        yk = y_stack[k].reshape(1, cc, 1, 1)
        inner = jnp.sum(hn * yk, axis=1)                              # (bb, hh, ww)
        mapk = 2.0 * (targets2 == k).astype(jnp.float32) - 1.0        # (bb, hh, ww)
        diff = inner[:, None, :, :] - mapk[None, :, :, :]             # (bb, bb, hh, ww)
        return jnp.mean(diff * diff)

    raw = jnp.stack([one(h00, 0), one(h11, 1), one(h22, 2)])
    losses = raw * (1.0 - eflags.astype(jnp.float32))
    return (float(losses[0]), float(losses[1]), float(losses[2]),
            float(jnp.sum(losses) / 4.0))


if __name__ == "__main__":
    key = jax.random.PRNGKey(0)
    kh0, kh1, kh2, kt1, kh00, kh11, kh22, kt2, ksel = jax.random.split(key, 9)

    # P = 18*18 = 324 is NOT a multiple of 128 -> exercises the in-kernel ragged-tail mask.
    b, c, h, w = 2, 4, 18, 18
    h_0 = jax.random.normal(kh0, (b, c, h, w), jnp.float32)
    h_1 = jax.random.normal(kh1, (b, c, h, w), jnp.float32)
    h_2 = jax.random.normal(kh2, (b, c, h, w), jnp.float32)
    targets1 = jax.random.randint(kt1, (b, h, w), 0, 3, jnp.int32)

    h_00 = jax.random.normal(kh00, (b, c, h, w), jnp.float32)
    h_11 = jax.random.normal(kh11, (b, c, h, w), jnp.float32)
    h_22 = jax.random.normal(kh22, (b, c, h, w), jnp.float32)
    targets2 = jax.random.randint(kt2, (b, h, w), 0, 3, jnp.int32)

    y_dummy = jnp.zeros((b,), jnp.float32)   # unused, mirrors the torch signature
    yy_dummy = jnp.zeros((b,), jnp.float32)  # unused, mirrors the torch signature

    # Same deterministic sampled y vectors / error flags the wrapper will use.
    k0, k1, k2 = jax.random.split(ksel, 3)
    y0, e0 = _pick_random_feature(h_0, targets1, 0, k0)
    y1, e1 = _pick_random_feature(h_1, targets1, 1, k1)
    y2, e2 = _pick_random_feature(h_2, targets1, 2, k2)
    y_stack = jnp.stack([y0, y1, y2], axis=0)
    eflags = jnp.stack([e0, e1, e2])

    # A) Default config: bf16 features, auto (single-tile) p_tile.
    out_a = square_loss(h_0, h_1, h_2, targets1, y_dummy,
                        h_00, h_11, h_22, targets2, yy_dummy, key=ksel)
    jax.block_until_ready(out_a)
    ref_a = _reference_square_loss(h_00.astype(jnp.bfloat16), h_11.astype(jnp.bfloat16),
                                   h_22.astype(jnp.bfloat16), targets2, y_stack, eflags)
    for got, want in zip(out_a, ref_a):
        err = abs(float(got) - want)
        assert err <= 2e-2 * max(1.0, abs(want)), ("bf16", float(got), want, err)

    # B) f32 features, p_tile=128 -> 3 spatial tiles incl. a ragged tail: exercises the
    #    VMEM accumulator carry across grid steps and the tail masking.
    out_b = square_loss(h_0, h_1, h_2, targets1, y_dummy,
                        h_00, h_11, h_22, targets2, yy_dummy, key=ksel,
                        p_tile=128, feature_dtype=jnp.float32)
    jax.block_until_ready(out_b)
    ref_b = _reference_square_loss(h_00, h_11, h_22, targets2, y_stack, eflags)
    for got, want in zip(out_b, ref_b):
        err = abs(float(got) - want)
        assert err <= 2e-2 * max(1.0, abs(want)), ("f32", float(got), want, err)

    print("KERNEL_OK")
</pallas_src>

<mosaic_0001>
module attributes {stable_mosaic.version = 11 : i64} {
  func.func @_square_loss_kernel(%arg0: i32, %arg1: memref<3x4x1xf32, #tpu.memory_space<vmem>>, %arg2: memref<3x384xf32, #tpu.memory_space<vmem>>, %arg3: memref<2x4x384xbf16, #tpu.memory_space<vmem>>, %arg4: memref<2x4x384xbf16, #tpu.memory_space<vmem>>, %arg5: memref<2x4x384xbf16, #tpu.memory_space<vmem>>, %arg6: memref<3xf32, #tpu.memory_space<smem>>, %arg7: memref<1x384xf32, #tpu.memory_space<vmem>>, %arg8: memref<1x384xf32, #tpu.memory_space<vmem>>, %arg9: memref<1x384xf32, #tpu.memory_space<vmem>>, %arg10: memref<1x384xf32, #tpu.memory_space<vmem>>, %arg11: memref<1x384xf32, #tpu.memory_space<vmem>>, %arg12: memref<1x384xf32, #tpu.memory_space<vmem>>) attributes {dimension_semantics = [#tpu.dimension_semantics<arbitrary>], iteration_bounds = array<i64: 1>, scalar_prefetch = 0 : i64, scratch_operands = 6 : i64, tpu.core_type = #tpu.core_type<tc>, window_params = [{pipeline_mode = #tpu.pipeline_mode<synchronous>, transform_indices = @transform_0, window_bounds = array<i64: 3, 4, 1>}, {transform_indices = @transform_1, window_bounds = array<i64: 3, 384>}, {transform_indices = @transform_2, window_bounds = array<i64: 2, 4, 384>}, {transform_indices = @transform_3, window_bounds = array<i64: 2, 4, 384>}, {transform_indices = @transform_4, window_bounds = array<i64: 2, 4, 384>}, {transform_indices = @transform_5, window_bounds = array<i64: 3>}]} {
    %c0_i32 = arith.constant 0 : i32
    %0 = arith.cmpi eq, %arg0, %c0_i32 : i32
    %1 = arith.extui %0 : i1 to i32
    %c0_i32_0 = arith.constant 0 : i32
    %2 = arith.cmpi ne, %1, %c0_i32_0 : i32
    scf.if %2 {
      %cst_58 = arith.constant 0.000000e+00 : f32
      %111 = vector.broadcast %cst_58 : f32 to vector<1x384xf32>
      %c0_59 = arith.constant 0 : index
      %c0_60 = arith.constant 0 : index
      %112 = vector.load %arg7[%c0_59, %c0_60] : memref<1x384xf32, #tpu.memory_space<vmem>>, vector<1x384xf32>
      tpu.vector_store %arg7[%c0_59, %c0_60], %111 {strides = array<i32>} : memref<1x384xf32, #tpu.memory_space<vmem>>, vector<1x384xf32>,
      %cst_61 = arith.constant 0.000000e+00 : f32
      %113 = vector.broadcast %cst_61 : f32 to vector<1x384xf32>
      %c0_62 = arith.constant 0 : index
      %c0_63 = arith.constant 0 : index
      %114 = vector.load %arg9[%c0_62, %c0_63] : memref<1x384xf32, #tpu.memory_space<vmem>>, vector<1x384xf32>
      tpu.vector_store %arg9[%c0_62, %c0_63], %113 {strides = array<i32>} : memref<1x384xf32, #tpu.memory_space<vmem>>, vector<1x384xf32>,
      %cst_64 = arith.constant 0.000000e+00 : f32
      %115 = vector.broadcast %cst_64 : f32 to vector<1x384xf32>
      %c0_65 = arith.constant 0 : index
      %c0_66 = arith.constant 0 : index
      %116 = vector.load %arg11[%c0_65, %c0_66] : memref<1x384xf32, #tpu.memory_space<vmem>>, vector<1x384xf32>
      tpu.vector_store %arg11[%c0_65, %c0_66], %115 {strides = array<i32>} : memref<1x384xf32, #tpu.memory_space<vmem>>, vector<1x384xf32>,
      %cst_67 = arith.constant 0.000000e+00 : f32
      %117 = vector.broadcast %cst_67 : f32 to vector<1x384xf32>
      %c0_68 = arith.constant 0 : index
      %c0_69 = arith.constant 0 : index
      %118 = vector.load %arg8[%c0_68, %c0_69] : memref<1x384xf32, #tpu.memory_space<vmem>>, vector<1x384xf32>
      tpu.vector_store %arg8[%c0_68, %c0_69], %117 {strides = array<i32>} : memref<1x384xf32, #tpu.memory_space<vmem>>, vector<1x384xf32>,
      %cst_70 = arith.constant 0.000000e+00 : f32
      %119 = vector.broadcast %cst_70 : f32 to vector<1x384xf32>
      %c0_71 = arith.constant 0 : index
      %c0_72 = arith.constant 0 : index
      %120 = vector.load %arg10[%c0_71, %c0_72] : memref<1x384xf32, #tpu.memory_space<vmem>>, vector<1x384xf32>
      tpu.vector_store %arg10[%c0_71, %c0_72], %119 {strides = array<i32>} : memref<1x384xf32, #tpu.memory_space<vmem>>, vector<1x384xf32>,
      %cst_73 = arith.constant 0.000000e+00 : f32
      %121 = vector.broadcast %cst_73 : f32 to vector<1x384xf32>
      %c0_74 = arith.constant 0 : index
      %c0_75 = arith.constant 0 : index
      %122 = vector.load %arg12[%c0_74, %c0_75] : memref<1x384xf32, #tpu.memory_space<vmem>>, vector<1x384xf32>
      tpu.vector_store %arg12[%c0_74, %c0_75], %121 {strides = array<i32>} : memref<1x384xf32, #tpu.memory_space<vmem>>, vector<1x384xf32>,
    } else {
    }
    %3 = tpu.iota {dimensions = array<i32: 1>} : vector<1x384xi32>
    %c384_i32 = arith.constant 384 : i32
    %4 = arith.muli %arg0, %c384_i32 : i32
    %5 = vector.broadcast %4 : i32 to vector<1x384xi32>
    %6 = arith.addi %5, %3 : vector<1x384xi32>
    %c324_i32 = arith.constant 324 : i32
    %7 = vector.broadcast %c324_i32 : i32 to vector<1x384xi32>
    %8 = arith.cmpi slt, %6, %7 : vector<1x384xi32>
    %c0 = arith.constant 0 : index
    %c0_1 = arith.constant 0 : index
    %c0_2 = arith.constant 0 : index
    %9 = vector.load %arg1[%c0, %c0_1, %c0_2] : memref<3x4x1xf32, #tpu.memory_space<vmem>>, vector<3x4x1xf32>
    %c0_3 = arith.constant 0 : index
    %c0_4 = arith.constant 0 : index
    %10 = vector.load %arg2[%c0_3, %c0_4] : memref<3x384xf32, #tpu.memory_space<vmem>>, vector<3x384xf32>
    %cst = arith.constant 0.000000e+00 : f32
    %11 = vector.shape_cast %8 : vector<1x384xi1> to vector<1x384xi1>
    %12 = vector.broadcast %11 : vector<1x384xi1> to vector<3x384xi1>
    %13 = vector.broadcast %cst : f32 to vector<3x384xf32>
    %14 = arith.select %12, %10, %13 : vector<3x384xi1>, vector<3x384xf32>
    %c0_5 = arith.constant 0 : index
    %c0_6 = arith.constant 0 : index
    %c0_7 = arith.constant 0 : index
    %15 = vector.load %arg3[%c0_5, %c0_6, %c0_7] : memref<2x4x384xbf16, #tpu.memory_space<vmem>>, vector<2x4x384xbf16>
    %16 = arith.extf %15 : vector<2x4x384xbf16> to vector<2x4x384xf32>
    %17 = vector.extract_strided_slice %9 {offsets = [0, 0, 0], sizes = [1, 4, 1], strides = [1, 1, 1]} : vector<3x4x1xf32> to vector<1x4x1xf32>
    %18 = vector.shape_cast %17 : vector<1x4x1xf32> to vector<4x1xf32>
    %19 = vector.shape_cast %18 : vector<4x1xf32> to vector<1x4x1xf32>
    %20 = vector.broadcast %19 : vector<1x4x1xf32> to vector<2x4x384xf32>
    %21 = arith.mulf %16, %20 : vector<2x4x384xf32>
    %cst_8 = arith.constant dense<0.000000e+00> : vector<2x384xf32>
    %22 = vector.multi_reduction <add>, %21, %cst_8 [1] : vector<2x4x384xf32> to vector<2x384xf32>
    %23 = arith.mulf %16, %16 : vector<2x4x384xf32>
    %cst_9 = arith.constant dense<0.000000e+00> : vector<2x384xf32>
    %24 = vector.multi_reduction <add>, %23, %cst_9 [1] : vector<2x4x384xf32> to vector<2x384xf32>
    %cst_10 = arith.constant 1.000000e-24 : f32
    %25 = vector.broadcast %cst_10 : f32 to vector<2x384xf32>
    %26 = arith.maximumf %24, %25 : vector<2x384xf32>
    %27 = math.rsqrt %26 : vector<2x384xf32>
    %28 = arith.mulf %22, %27 : vector<2x384xf32>
    %cst_11 = arith.constant 0.000000e+00 : f32
    %29 = vector.shape_cast %8 : vector<1x384xi1> to vector<1x384xi1>
    %30 = vector.broadcast %29 : vector<1x384xi1> to vector<2x384xi1>
    %31 = vector.broadcast %cst_11 : f32 to vector<2x384xf32>
    %32 = arith.select %30, %28, %31 : vector<2x384xi1>, vector<2x384xf32>
    %c0_12 = arith.constant 0 : index
    %c0_13 = arith.constant 0 : index
    %33 = vector.load %arg7[%c0_12, %c0_13] : memref<1x384xf32, #tpu.memory_space<vmem>>, vector<1x384xf32>
    %34 = arith.mulf %32, %32 : vector<2x384xf32>
    %cst_14 = arith.constant dense<0.000000e+00> : vector<384xf32>
    %35 = vector.multi_reduction <add>, %34, %cst_14 [0] : vector<2x384xf32> to vector<384xf32>
    %36 = vector.shape_cast %35 : vector<384xf32> to vector<1x384xf32>
    %37 = arith.addf %33, %36 : vector<1x384xf32>
    %c0_15 = arith.constant 0 : index
    %c0_16 = arith.constant 0 : index
    %38 = vector.load %arg7[%c0_15, %c0_16] : memref<1x384xf32, #tpu.memory_space<vmem>>, vector<1x384xf32>
    tpu.vector_store %arg7[%c0_15, %c0_16], %37 {strides = array<i32>} : memref<1x384xf32, #tpu.memory_space<vmem>>, vector<1x384xf32>,
    %c0_17 = arith.constant 0 : index
    %c0_18 = arith.constant 0 : index
    %39 = vector.load %arg8[%c0_17, %c0_18] : memref<1x384xf32, #tpu.memory_space<vmem>>, vector<1x384xf32>
    %cst_19 = arith.constant dense<0.000000e+00> : vector<384xf32>
    %40 = vector.multi_reduction <add>, %32, %cst_19 [0] : vector<2x384xf32> to vector<384xf32>
    %41 = vector.shape_cast %40 : vector<384xf32> to vector<1x384xf32>
    %42 = vector.extract_strided_slice %14 {offsets = [0, 0], sizes = [1, 384], strides = [1, 1]} : vector<3x384xf32> to vector<1x384xf32>
    %43 = arith.mulf %41, %42 : vector<1x384xf32>
    %44 = arith.addf %39, %43 : vector<1x384xf32>
    %c0_20 = arith.constant 0 : index
    %c0_21 = arith.constant 0 : index
    %45 = vector.load %arg8[%c0_20, %c0_21] : memref<1x384xf32, #tpu.memory_space<vmem>>, vector<1x384xf32>
    tpu.vector_store %arg8[%c0_20, %c0_21], %44 {strides = array<i32>} : memref<1x384xf32, #tpu.memory_space<vmem>>, vector<1x384xf32>,
    %c0_22 = arith.constant 0 : index
    %c0_23 = arith.constant 0 : index
    %c0_24 = arith.constant 0 : index
    %46 = vector.load %arg4[%c0_22, %c0_23, %c0_24] : memref<2x4x384xbf16, #tpu.memory_space<vmem>>, vector<2x4x384xbf16>
    %47 = arith.extf %46 : vector<2x4x384xbf16> to vector<2x4x384xf32>
    %48 = vector.extract_strided_slice %9 {offsets = [1, 0, 0], sizes = [1, 4, 1], strides = [1, 1, 1]} : vector<3x4x1xf32> to vector<1x4x1xf32>
    %49 = vector.shape_cast %48 : vector<1x4x1xf32> to vector<4x1xf32>
    %50 = vector.shape_cast %49 : vector<4x1xf32> to vector<1x4x1xf32>
    %51 = vector.broadcast %50 : vector<1x4x1xf32> to vector<2x4x384xf32>
    %52 = arith.mulf %47, %51 : vector<2x4x384xf32>
    %cst_25 = arith.constant dense<0.000000e+00> : vector<2x384xf32>
    %53 = vector.multi_reduction <add>, %52, %cst_25 [1] : vector<2x4x384xf32> to vector<2x384xf32>
    %54 = arith.mulf %47, %47 : vector<2x4x384xf32>
    %cst_26 = arith.constant dense<0.000000e+00> : vector<2x384xf32>
    %55 = vector.multi_reduction <add>, %54, %cst_26 [1] : vector<2x4x384xf32> to vector<2x384xf32>
    %cst_27 = arith.constant 1.000000e-24 : f32
    %56 = vector.broadcast %cst_27 : f32 to vector<2x384xf32>
    %57 = arith.maximumf %55, %56 : vector<2x384xf32>
    %58 = math.rsqrt %57 : vector<2x384xf32>
    %59 = arith.mulf %53, %58 : vector<2x384xf32>
    %cst_28 = arith.constant 0.000000e+00 : f32
    %60 = vector.shape_cast %8 : vector<1x384xi1> to vector<1x384xi1>
    %61 = vector.broadcast %60 : vector<1x384xi1> to vector<2x384xi1>
    %62 = vector.broadcast %cst_28 : f32 to vector<2x384xf32>
    %63 = arith.select %61, %59, %62 : vector<2x384xi1>, vector<2x384xf32>
    %c0_29 = arith.constant 0 : index
    %c0_30 = arith.constant 0 : index
    %64 = vector.load %arg9[%c0_29, %c0_30] : memref<1x384xf32, #tpu.memory_space<vmem>>, vector<1x384xf32>
    %65 = arith.mulf %63, %63 : vector<2x384xf32>
    %cst_31 = arith.constant dense<0.000000e+00> : vector<384xf32>
    %66 = vector.multi_reduction <add>, %65, %cst_31 [0] : vector<2x384xf32> to vector<384xf32>
    %67 = vector.shape_cast %66 : vector<384xf32> to vector<1x384xf32>
    %68 = arith.addf %64, %67 : vector<1x384xf32>
    %c0_32 = arith.constant 0 : index
    %c0_33 = arith.constant 0 : index
    %69 = vector.load %arg9[%c0_32, %c0_33] : memref<1x384xf32, #tpu.memory_space<vmem>>, vector<1x384xf32>
    tpu.vector_store %arg9[%c0_32, %c0_33], %68 {strides = array<i32>} : memref<1x384xf32, #tpu.memory_space<vmem>>, vector<1x384xf32>,
    %c0_34 = arith.constant 0 : index
    %c0_35 = arith.constant 0 : index
    %70 = vector.load %arg10[%c0_34, %c0_35] : memref<1x384xf32, #tpu.memory_space<vmem>>, vector<1x384xf32>
    %cst_36 = arith.constant dense<0.000000e+00> : vector<384xf32>
    %71 = vector.multi_reduction <add>, %63, %cst_36 [0] : vector<2x384xf32> to vector<384xf32>
    %72 = vector.shape_cast %71 : vector<384xf32> to vector<1x384xf32>
    %73 = vector.extract_strided_slice %14 {offsets = [1, 0], sizes = [1, 384], strides = [1, 1]} : vector<3x384xf32> to vector<1x384xf32>
    %74 = arith.mulf %72, %73 : vector<1x384xf32>
    %75 = arith.addf %70, %74 : vector<1x384xf32>
    %c0_37 = arith.constant 0 : index
    %c0_38 = arith.constant 0 : index
    %76 = vector.load %arg10[%c0_37, %c0_38] : memref<1x384xf32, #tpu.memory_space<vmem>>, vector<1x384xf32>
    tpu.vector_store %arg10[%c0_37, %c0_38], %75 {strides = array<i32>} : memref<1x384xf32, #tpu.memory_space<vmem>>, vector<1x384xf32>,
    %c0_39 = arith.constant 0 : index
    %c0_40 = arith.constant 0 : index
    %c0_41 = arith.constant 0 : index
    %77 = vector.load %arg5[%c0_39, %c0_40, %c0_41] : memref<2x4x384xbf16, #tpu.memory_space<vmem>>, vector<2x4x384xbf16>
    %78 = arith.extf %77 : vector<2x4x384xbf16> to vector<2x4x384xf32>
    %79 = vector.extract_strided_slice %9 {offsets = [2, 0, 0], sizes = [1, 4, 1], strides = [1, 1, 1]} : vector<3x4x1xf32> to vector<1x4x1xf32>
    %80 = vector.shape_cast %79 : vector<1x4x1xf32> to vector<4x1xf32>
    %81 = vector.shape_cast %80 : vector<4x1xf32> to vector<1x4x1xf32>
    %82 = vector.broadcast %81 : vector<1x4x1xf32> to vector<2x4x384xf32>
    %83 = arith.mulf %78, %82 : vector<2x4x384xf32>
    %cst_42 = arith.constant dense<0.000000e+00> : vector<2x384xf32>
    %84 = vector.multi_reduction <add>, %83, %cst_42 [1] : vector<2x4x384xf32> to vector<2x384xf32>
    %85 = arith.mulf %78, %78 : vector<2x4x384xf32>
    %cst_43 = arith.constant dense<0.000000e+00> : vector<2x384xf32>
    %86 = vector.multi_reduction <add>, %85, %cst_43 [1] : vector<2x4x384xf32> to vector<2x384xf32>
    %cst_44 = arith.constant 1.000000e-24 : f32
    %87 = vector.broadcast %cst_44 : f32 to vector<2x384xf32>
    %88 = arith.maximumf %86, %87 : vector<2x384xf32>
    %89 = math.rsqrt %88 : vector<2x384xf32>
    %90 = arith.mulf %84, %89 : vector<2x384xf32>
    %cst_45 = arith.constant 0.000000e+00 : f32
    %91 = vector.shape_cast %8 : vector<1x384xi1> to vector<1x384xi1>
    %92 = vector.broadcast %91 : vector<1x384xi1> to vector<2x384xi1>
    %93 = vector.broadcast %cst_45 : f32 to vector<2x384xf32>
    %94 = arith.select %92, %90, %93 : vector<2x384xi1>, vector<2x384xf32>
    %c0_46 = arith.constant 0 : index
    %c0_47 = arith.constant 0 : index
    %95 = vector.load %arg11[%c0_46, %c0_47] : memref<1x384xf32, #tpu.memory_space<vmem>>, vector<1x384xf32>
    %96 = arith.mulf %94, %94 : vector<2x384xf32>
    %cst_48 = arith.constant dense<0.000000e+00> : vector<384xf32>
    %97 = vector.multi_reduction <add>, %96, %cst_48 [0] : vector<2x384xf32> to vector<384xf32>
    %98 = vector.shape_cast %97 : vector<384xf32> to vector<1x384xf32>
    %99 = arith.addf %95, %98 : vector<1x384xf32>
    %c0_49 = arith.constant 0 : index
    %c0_50 = arith.constant 0 : index
    %100 = vector.load %arg11[%c0_49, %c0_50] : memref<1x384xf32, #tpu.memory_space<vmem>>, vector<1x384xf32>
    tpu.vector_store %arg11[%c0_49, %c0_50], %99 {strides = array<i32>} : memref<1x384xf32, #tpu.memory_space<vmem>>, vector<1x384xf32>,
    %c0_51 = arith.constant 0 : index
    %c0_52 = arith.constant 0 : index
    %101 = vector.load %arg12[%c0_51, %c0_52] : memref<1x384xf32, #tpu.memory_space<vmem>>, vector<1x384xf32>
    %cst_53 = arith.constant dense<0.000000e+00> : vector<384xf32>
    %102 = vector.multi_reduction <add>, %94, %cst_53 [0] : vector<2x384xf32> to vector<384xf32>
    %103 = vector.shape_cast %102 : vector<384xf32> to vector<1x384xf32>
    %104 = vector.extract_strided_slice %14 {offsets = [2, 0], sizes = [1, 384], strides = [1, 1]} : vector<3x384xf32> to vector<1x384xf32>
    %105 = arith.mulf %103, %104 : vector<1x384xf32>
    %106 = arith.addf %101, %105 : vector<1x384xf32>
    %c0_54 = arith.constant 0 : index
    %c0_55 = arith.constant 0 : index
    %107 = vector.load %arg12[%c0_54, %c0_55] : memref<1x384xf32, #tpu.memory_space<vmem>>, vector<1x384xf32>
    tpu.vector_store %arg12[%c0_54, %c0_55], %106 {strides = array<i32>} : memref<1x384xf32, #tpu.memory_space<vmem>>, vector<1x384xf32>,
    %c0_i32_56 = arith.constant 0 : i32
    %108 = arith.cmpi eq, %arg0, %c0_i32_56 : i32
    %109 = arith.extui %108 : i1 to i32
    %c0_i32_57 = arith.constant 0 : i32
    %110 = arith.cmpi ne, %109, %c0_i32_57 : i32
    scf.if %110 {
      %c0_58 = arith.constant 0 : index
      %c0_59 = arith.constant 0 : index
      %111 = vector.load %arg7[%c0_58, %c0_59] : memref<1x384xf32, #tpu.memory_space<vmem>>, vector<1x384xf32>
      %112 = vector.shape_cast %111 : vector<1x384xf32> to vector<1x1x384xf32>
      %cst_60 = arith.constant dense<0.000000e+00> : vector<1xf32>
      %113 = vector.multi_reduction <add>, %112, %cst_60 [1, 2] : vector<1x1x384xf32> to vector<1xf32>
      %114 = vector.shape_cast %113 : vector<1xf32> to vector<1x1x1xf32>
      %115 = vector.extract %114[0, 0, 0] : f32 from vector<1x1x1xf32>
      %c0_61 = arith.constant 0 : index
      %c0_62 = arith.constant 0 : index
      %116 = vector.load %arg8[%c0_61, %c0_62] : memref<1x384xf32, #tpu.memory_space<vmem>>, vector<1x384xf32>
      %117 = vector.shape_cast %116 : vector<1x384xf32> to vector<1x1x384xf32>
      %cst_63 = arith.constant dense<0.000000e+00> : vector<1xf32>
      %118 = vector.multi_reduction <add>, %117, %cst_63 [1, 2] : vector<1x1x384xf32> to vector<1xf32>
      %119 = vector.shape_cast %118 : vector<1xf32> to vector<1x1x1xf32>
      %120 = vector.extract %119[0, 0, 0] : f32 from vector<1x1x1xf32>
      %cst_64 = arith.constant 2.000000e+00 : f32
      %121 = arith.mulf %cst_64, %115 : f32
      %cst_65 = arith.constant 2.000000e+00 : f32
      %122 = arith.mulf %cst_65, %120 : f32
      %123 = arith.subf %121, %122 : f32
      %cst_66 = arith.constant 1.296000e+03 : f32
      %124 = arith.divf %123, %cst_66 : f32
      %cst_67 = arith.constant 1.000000e+00 : f32
      %125 = arith.addf %124, %cst_67 : f32
      %c0_68 = arith.constant 0 : index
      %126 = memref.load %arg6[%c0_68] : memref<3xf32, #tpu.memory_space<smem>>
      memref.store %125, %arg6[%c0_68] : memref<3xf32, #tpu.memory_space<smem>>
      %c0_69 = arith.constant 0 : index
      %c0_70 = arith.constant 0 : index
      %127 = vector.load %arg9[%c0_69, %c0_70] : memref<1x384xf32, #tpu.memory_space<vmem>>, vector<1x384xf32>
      %128 = vector.shape_cast %127 : vector<1x384xf32> to vector<1x1x384xf32>
      %cst_71 = arith.constant dense<0.000000e+00> : vector<1xf32>
      %129 = vector.multi_reduction <add>, %128, %cst_71 [1, 2] : vector<1x1x384xf32> to vector<1xf32>
      %130 = vector.shape_cast %129 : vector<1xf32> to vector<1x1x1xf32>
      %131 = vector.extract %130[0, 0, 0] : f32 from vector<1x1x1xf32>
      %c0_72 = arith.constant 0 : index
      %c0_73 = arith.constant 0 : index
      %132 = vector.load %arg10[%c0_72, %c0_73] : memref<1x384xf32, #tpu.memory_space<vmem>>, vector<1x384xf32>
      %133 = vector.shape_cast %132 : vector<1x384xf32> to vector<1x1x384xf32>
      %cst_74 = arith.constant dense<0.000000e+00> : vector<1xf32>
      %134 = vector.multi_reduction <add>, %133, %cst_74 [1, 2] : vector<1x1x384xf32> to vector<1xf32>
      %135 = vector.shape_cast %134 : vector<1xf32> to vector<1x1x1xf32>
      %136 = vector.extract %135[0, 0, 0] : f32 from vector<1x1x1xf32>
      %cst_75 = arith.constant 2.000000e+00 : f32
      %137 = arith.mulf %cst_75, %131 : f32
      %cst_76 = arith.constant 2.000000e+00 : f32
      %138 = arith.mulf %cst_76, %136 : f32
      %139 = arith.subf %137, %138 : f32
      %cst_77 = arith.constant 1.296000e+03 : f32
      %140 = arith.divf %139, %cst_77 : f32
      %cst_78 = arith.constant 1.000000e+00 : f32
      %141 = arith.addf %140, %cst_78 : f32
      %c1 = arith.constant 1 : index
      %142 = memref.load %arg6[%c1] : memref<3xf32, #tpu.memory_space<smem>>
      memref.store %141, %arg6[%c1] : memref<3xf32, #tpu.memory_space<smem>>
      %c0_79 = arith.constant 0 : index
      %c0_80 = arith.constant 0 : index
      %143 = vector.load %arg11[%c0_79, %c0_80] : memref<1x384xf32, #tpu.memory_space<vmem>>, vector<1x384xf32>
      %144 = vector.shape_cast %143 : vector<1x384xf32> to vector<1x1x384xf32>
      %cst_81 = arith.constant dense<0.000000e+00> : vector<1xf32>
      %145 = vector.multi_reduction <add>, %144, %cst_81 [1, 2] : vector<1x1x384xf32> to vector<1xf32>
      %146 = vector.shape_cast %145 : vector<1xf32> to vector<1x1x1xf32>
      %147 = vector.extract %146[0, 0, 0] : f32 from vector<1x1x1xf32>
      %c0_82 = arith.constant 0 : index
      %c0_83 = arith.constant 0 : index
      %148 = vector.load %arg12[%c0_82, %c0_83] : memref<1x384xf32, #tpu.memory_space<vmem>>, vector<1x384xf32>
      %149 = vector.shape_cast %148 : vector<1x384xf32> to vector<1x1x384xf32>
      %cst_84 = arith.constant dense<0.000000e+00> : vector<1xf32>
      %150 = vector.multi_reduction <add>, %149, %cst_84 [1, 2] : vector<1x1x384xf32> to vector<1xf32>
      %151 = vector.shape_cast %150 : vector<1xf32> to vector<1x1x1xf32>
      %152 = vector.extract %151[0, 0, 0] : f32 from vector<1x1x1xf32>
      %cst_85 = arith.constant 2.000000e+00 : f32
      %153 = arith.mulf %cst_85, %147 : f32
      %cst_86 = arith.constant 2.000000e+00 : f32
      %154 = arith.mulf %cst_86, %152 : f32
      %155 = arith.subf %153, %154 : f32
      %cst_87 = arith.constant 1.296000e+03 : f32
      %156 = arith.divf %155, %cst_87 : f32
      %cst_88 = arith.constant 1.000000e+00 : f32
      %157 = arith.addf %156, %cst_88 : f32
      %c2 = arith.constant 2 : index
      %158 = memref.load %arg6[%c2] : memref<3xf32, #tpu.memory_space<smem>>
      memref.store %157, %arg6[%c2] : memref<3xf32, #tpu.memory_space<smem>>
    } else {
    }
    return
  }
  func.func @transform_0(%arg0: i32) -> (i32, i32, i32) {
    %c0_i32 = arith.constant 0 : i32
    %c0_i32_0 = arith.constant 0 : i32
    %c0_i32_1 = arith.constant 0 : i32
    %c0_i32_2 = arith.constant 0 : i32
    return %c0_i32, %c0_i32_0, %c0_i32_1 : i32, i32, i32
  }
  func.func @transform_1(%arg0: i32) -> (i32, i32) {
    %c0_i32 = arith.constant 0 : i32
    %c0_i32_0 = arith.constant 0 : i32
    return %c0_i32, %arg0 : i32, i32
  }
  func.func @transform_2(%arg0: i32) -> (i32, i32, i32) {
    %c0_i32 = arith.constant 0 : i32
    %c0_i32_0 = arith.constant 0 : i32
    %c0_i32_1 = arith.constant 0 : i32
    return %c0_i32, %c0_i32_0, %arg0 : i32, i32, i32
  }
  func.func @transform_3(%arg0: i32) -> (i32, i32, i32) {
    %c0_i32 = arith.constant 0 : i32
    %c0_i32_0 = arith.constant 0 : i32
    %c0_i32_1 = arith.constant 0 : i32
    return %c0_i32, %c0_i32_0, %arg0 : i32, i32, i32
  }
  func.func @transform_4(%arg0: i32) -> (i32, i32, i32) {
    %c0_i32 = arith.constant 0 : i32
    %c0_i32_0 = arith.constant 0 : i32
    %c0_i32_1 = arith.constant 0 : i32
    return %c0_i32, %c0_i32_0, %arg0 : i32, i32, i32
  }
  func.func @transform_5(%arg0: i32) -> i32 {
    %c0_i32 = arith.constant 0 : i32
    %c0_i32_0 = arith.constant 0 : i32
    return %c0_i32 : i32
  }
}

</mosaic_0001>

<llo_original>
// kernel: tpu_custom_call.1
$region0: #{tpu_custom_call.1}
  #allocation0 [shape = 'u32[]', space=smem, size = 0x4, offset = 0x4, fixed_abs, tag = 'smem constant byte address 0x4 - core index']
  #allocation1 [shape = 'u32[144,128]{1,0:T(1,128)}', space=vmem, size = 0x12000, scoped, tag = 'internal scratch']
  #allocation2 [shape = 'f32[1,384]{1,0:T(1,128)}', space=vmem, size = 0x600, scoped, tag = 'scratch operand']
  #allocation3 [shape = 'f32[1,384]{1,0:T(1,128)}', space=vmem, size = 0x600, scoped, tag = 'scratch operand']
  #allocation4 [shape = 'f32[1,384]{1,0:T(1,128)}', space=vmem, size = 0x600, scoped, tag = 'scratch operand']
  #allocation5 [shape = 'f32[1,384]{1,0:T(1,128)}', space=vmem, size = 0x600, scoped, tag = 'scratch operand']
  #allocation6 [shape = 'f32[1,384]{1,0:T(1,128)}', space=vmem, size = 0x600, scoped, tag = 'scratch operand']
  #allocation7 [shape = 'f32[1,384]{1,0:T(1,128)}', space=vmem, size = 0x600, scoped, tag = 'scratch operand']
  %s0 = inlined_call_operand.vmem [shape: f32[3,4,1], index: 0, kind: input, shape index: {}]
  %s1 = inlined_call_operand.vmem [shape: f32[3,324], index: 1, kind: input, shape index: {}]
  %s2 = inlined_call_operand.hbm [shape: bf16[2,4,324], index: 2, kind: input, shape index: {}]
  %s3 = inlined_call_operand.hbm [shape: bf16[2,4,324], index: 3, kind: input, shape index: {}]
  %s4 = inlined_call_operand.hbm [shape: bf16[2,4,324], index: 4, kind: input, shape index: {}]
  %s5 = inlined_call_operand.hbm [shape: f32[3], index: 5, kind: output, shape index: {}]
  %s6 = sld [smem:[#allocation0]]
  $region50: #{tpu_custom_call.1} parent=0
    _
  %s8 = ssub.s32 1, %s6
  %s9 = scalar_select 0, %s8, %s6
  $region1: #{tpu_custom_call.1} parent=0
    #allocation8 [shape = 'u8[6144]{0}', space=vmem, size = 0x1800, scoped, tag = 'input window, operand 2, single buffered']
    #allocation9 [shape = 's32[1]{0}', space=sflag, size = 0x4, scoped, tag = 'scoped memory for tpu_custom_call.1']
    #allocation10 [shape = 's32[1]{0}', space=sflag, size = 0x4, scoped, tag = 'scoped memory for tpu_custom_call.1']
    #allocation11 [shape = 'u8[6144]{0}', space=vmem, size = 0x1800, scoped, tag = 'input window, operand 3, single buffered']
    #allocation12 [shape = 's32[1]{0}', space=sflag, size = 0x4, scoped, tag = 'scoped memory for tpu_custom_call.1']
    #allocation13 [shape = 'u8[6144]{0}', space=vmem, size = 0x1800, scoped, tag = 'input window, operand 4, single buffered']
    #allocation14 [shape = 'u8[512]{0}', space=smem, size = 0x200, scoped, tag = 'output window, operand 0, single buffered']
    %10 = vsyncpa [#allocation9], 0
    %11 = vsyncpa [#allocation12], 0
    %12 = vsyncpa [#allocation10], 0
    // Predicated region
    $region2: #{tpu_custom_call.1} parent=1 // pred_check
      _
    $region3: #{tpu_custom_call.1} parent=1 // pred_check_branch
      %14 = sbr.rel (0) target = $region5
    $region4: #{tpu_custom_call.1} parent=1 // pred_region
      _
    $region5: #{tpu_custom_call.1} parent=1 // pred_fallthru
      _
    // Predicated region
    $region6: #{tpu_custom_call.1} parent=1 // pred_check
      _
    $region7: #{tpu_custom_call.1} parent=1 // pred_check_branch
      %16 = sbr.rel (0) target = $region9
    $region8: #{tpu_custom_call.1} parent=1 // pred_region
      _
    $region9: #{tpu_custom_call.1} parent=1 // pred_fallthru
      _
    // Predicated region
    $region10: #{tpu_custom_call.1} parent=1 // pred_check
      _
    $region11: #{tpu_custom_call.1} parent=1 // pred_check_branch
      %18 = sbr.rel (0) target = $region13
    $region12: #{tpu_custom_call.1} parent=1 // pred_region
      %s20 = ssub.s32 192, 192
      %21 = vsyncadd [#allocation9], %s20
      %s22 = sshll.u32 [#allocation8], 4
      %s23 = int_to_ptr.vmem [resolvable:$true] %s22
      %28 = dma.hbm_to_vmem [thread:$0]  %s2, 192, %s23, [#allocation9], 96, 96, 6
    $region13: #{tpu_custom_call.1} parent=1 // pred_fallthru
      _
    // Predicated region
    $region14: #{tpu_custom_call.1} parent=1 // pred_check
      _
    $region15: #{tpu_custom_call.1} parent=1 // pred_check_branch
      %30 = sbr.rel (0) target = $region17
    $region16: #{tpu_custom_call.1} parent=1 // pred_region
      %s32 = ssub.s32 192, 192
      %33 = vsyncadd [#allocation12], %s32
      %s34 = sshll.u32 [#allocation11], 4
      %s35 = int_to_ptr.vmem [resolvable:$true] %s34
      %40 = dma.hbm_to_vmem [thread:$0]  %s3, 192, %s35, [#allocation12], 96, 96, 6
    $region17: #{tpu_custom_call.1} parent=1 // pred_fallthru
      _
    // Predicated region
    $region18: #{tpu_custom_call.1} parent=1 // pred_check
      _
    $region19: #{tpu_custom_call.1} parent=1 // pred_check_branch
      %42 = sbr.rel (0) target = $region21
    $region20: #{tpu_custom_call.1} parent=1 // pred_region
      %s44 = ssub.s32 192, 192
      %45 = vsyncadd [#allocation12], %s44
      %s46 = sshll.u32 [#allocation13], 4
      %s47 = int_to_ptr.vmem [resolvable:$true] %s46
      %52 = dma.hbm_to_vmem [thread:$0]  %s4, 192, %s47, [#allocation12], 96, 96, 6
    $region21: #{tpu_custom_call.1} parent=1 // pred_fallthru
      _
    // Predicated region
    $region22: #{tpu_custom_call.1} parent=1 // pred_check
      _
    $region23: #{tpu_custom_call.1} parent=1 // pred_check_branch
      %54 = sbr.rel (0) target = $region25
    $region24: #{tpu_custom_call.1} parent=1 // pred_region
      %55 = dma.done [#allocation9], 192
    $region25: #{tpu_custom_call.1} parent=1 // pred_fallthru
      _
    // Predicated region
    $region26: #{tpu_custom_call.1} parent=1 // pred_check
      _
    $region27: #{tpu_custom_call.1} parent=1 // pred_check_branch
      %57 = sbr.rel (0) target = $region29
    $region28: #{tpu_custom_call.1} parent=1 // pred_region
      %58 = dma.done [#allocation12], 192
    $region29: #{tpu_custom_call.1} parent=1 // pred_fallthru
      _
    // Predicated region
    $region30: #{tpu_custom_call.1} parent=1 // pred_check
      _
    $region31: #{tpu_custom_call.1} parent=1 // pred_check_branch
      %60 = sbr.rel (0) target = $region33
    $region32: #{tpu_custom_call.1} parent=1 // pred_region
      %61 = dma.done [#allocation12], 192
    $region33: #{tpu_custom_call.1} parent=1 // pred_fallthru
      _
    %p62 = scmp.eq.s32.totalorder 0, 0
    // Predicated region
    $region34: #{tpu_custom_call.1} parent=1 // pred_check
      %p63 = pneg %p62
    $region35: #{tpu_custom_call.1} parent=1 // pred_check_branch
      %65 = sbr.rel (%p63) target = $region37
    $region36: #{tpu_custom_call.1} parent=1 // pred_region
      %v66 = vlaneseq
      %vm67 = vcmp.ge.s32.totalorder %v66, 0
      %vm68 = vcmp.lt.s32.totalorder %v66, 384
      %vm69 = vmand %vm67, %vm68
      %70 = vst.msk [vmem:[#allocation2] sm:$0x7] %vm69, 0.0
      %71 = vst.msk [vmem:[#allocation4] sm:$0x7] %vm69, 0.0
      %72 = vst.msk [vmem:[#allocation6] sm:$0x7] %vm69, 0.0
      %73 = vst.msk [vmem:[#allocation3] sm:$0x7] %vm69, 0.0
      %74 = vst.msk [vmem:[#allocation5] sm:$0x7] %vm69, 0.0
      %75 = vst.msk [vmem:[#allocation7] sm:$0x7] %vm69, 0.0
    $region37: #{tpu_custom_call.1} parent=1 // pred_fallthru
      _
    %v76 = vlaneseq
    %v77 = vand.u32 %v76, 127
    %v78 = vadd.s32 %v77, 128
    %v79 = vadd.s32 %v77, 256
    %s80 = smul.u32 0, 384
    %v81 = vstv %s80
    %v82 = vadd.s32 %v81, %v77
    %v83 = vadd.s32 %v81, %v78
    %v84 = vadd.s32 %v81, %v79
    %vm85 = vcmp.lt.s32.totalorder %v82, 324
    %vm86 = vcmp.lt.s32.totalorder %v83, 324
    %vm87 = vcmp.lt.s32.totalorder %v84, 324
    %v88 = vld [vmem:[%s0] sm:$0xf]
    %v89 = vld [vmem:[%s0 + $0x4] sm:$0xf]
    %v90 = vld [vmem:[%s0 + $0x8] sm:$0xf]
    %v91 = vld [vmem:[%s1] sm:$0x77]
    %v92 = vld [vmem:[%s1 + $0x8] sm:$0x7]
    %v93 = vsel %vm85, 1, 0
    %v94 = vsel %vm86, 1, 0
    %v95 = vsel %vm87, 1, 0
    %vm96 = vcmp.eq.s32.totalorder %v93, 1
    %vm97 = vcmp.eq.s32.totalorder %v94, 1
    %vm98 = vcmp.eq.s32.totalorder %v95, 1
    %v100 = vcombine.high %v91, %v91
    %v102 = vsel %vm96, %v91, 0.0
    %v103 = vsel %vm97, %v100, 0.0
    %v104 = vsel %vm98, %v92, 0.0
    %v105 = vld [vmem:[#allocation8] sm:$0x3f]
    %v106 = vld [vmem:[#allocation8 + $0x6] sm:$0x3f]
    %v107 = vunpack.c.l.bf16 %v105
    %v108 = vunpack.c.h.bf16 %v105
    %v109 = vunpack.c.l.bf16 %v106
    %v110 = vunpack.c.h.bf16 %v106
    %112 = vset.pattern.permute.xlu0 0
    %113 = vperm.xlu0 %112, %v88
    %v114 = vpop.permute.xlu0 %113
    %v116 = vunpack.c.l.s4 839922192
    %v117 = vunpack.c.0.s8 %v116
    %v118 = vlaneseq
    %v119 = vshrl.u32 %v118, 7
    %v120 = vsub.s32 %v117, %v119
    %v121 = vrot.slane %v114, %v120
    %v123 = vmul.f32 %v107, %v121
    %v124 = vmul.f32 %v108, %v121
    %v125 = vmul.f32 %v109, %v121
    %v126 = vmul.f32 %v110, %v121
    %v129 = vcombine.high %v123, %v123
    %v130 = vcombine.high %v125, %v125
    %vm133 = vcmask 1043456
    %v134 = vsel %vm133, %v123, 0.0
    %v135 = vrot.slane %v134, 4
    %v136 = vadd.f32 %v134, %v135
    %v137 = vrot.slane %v136, 2
    %v138 = vadd.f32 %v136, %v137
    %v139 = vrot.slane %v138, 1
    %v140 = vadd.f32 %v138, %v139
    %v141 = vsel %vm133, %v129, 0.0
    %v142 = vrot.slane %v141, 4
    %v143 = vadd.f32 %v141, %v142
    %v144 = vrot.slane %v143, 2
    %v145 = vadd.f32 %v143, %v144
    %v146 = vrot.slane %v145, 1
    %v147 = vadd.f32 %v145, %v146
    %v148 = vsel %vm133, %v124, 0.0
    %v149 = vrot.slane %v148, 4
    %v150 = vadd.f32 %v148, %v149
    %v151 = vrot.slane %v150, 2
    %v152 = vadd.f32 %v150, %v151
    %v153 = vrot.slane %v152, 1
    %v154 = vadd.f32 %v152, %v153
    %v155 = vsel %vm133, %v125, 0.0
    %v156 = vrot.slane %v155, 4
    %v157 = vadd.f32 %v155, %v156
    %v158 = vrot.slane %v157, 2
    %v159 = vadd.f32 %v157, %v158
    %v160 = vrot.slane %v159, 1
    %v161 = vadd.f32 %v159, %v160
    %v162 = vsel %vm133, %v130, 0.0
    %v163 = vrot.slane %v162, 4
    %v164 = vadd.f32 %v162, %v163
    %v165 = vrot.slane %v164, 2
    %v166 = vadd.f32 %v164, %v165
    %v167 = vrot.slane %v166, 1
    %v168 = vadd.f32 %v166, %v167
    %v169 = vsel %vm133, %v126, 0.0
    %v170 = vrot.slane %v169, 4
    %v171 = vadd.f32 %v169, %v170
    %v172 = vrot.slane %v171, 2
    %v173 = vadd.f32 %v171, %v172
    %v174 = vrot.slane %v173, 1
    %v175 = vadd.f32 %v173, %v174
    %v176 = vmul.f32 %v107, %v107
    %v177 = vmul.f32 %v108, %v108
    %v178 = vmul.f32 %v109, %v109
    %v179 = vmul.f32 %v110, %v110
    %v182 = vcombine.high %v176, %v176
    %v183 = vcombine.high %v178, %v178
    %v186 = vsel %vm133, %v176, 0.0
    %v187 = vrot.slane %v186, 4
    %v188 = vadd.f32 %v186, %v187
    %v189 = vrot.slane %v188, 2
    %v190 = vadd.f32 %v188, %v189
    %v191 = vrot.slane %v190, 1
    %v192 = vadd.f32 %v190, %v191
    %v193 = vsel %vm133, %v182, 0.0
    %v194 = vrot.slane %v193, 4
    %v195 = vadd.f32 %v193, %v194
    %v196 = vrot.slane %v195, 2
    %v197 = vadd.f32 %v195, %v196
    %v198 = vrot.slane %v197, 1
    %v199 = vadd.f32 %v197, %v198
    %v200 = vsel %vm133, %v177, 0.0
    %v201 = vrot.slane %v200, 4
    %v202 = vadd.f32 %v200, %v201
    %v203 = vrot.slane %v202, 2
    %v204 = vadd.f32 %v202, %v203
    %v205 = vrot.slane %v204, 1
    %v206 = vadd.f32 %v204, %v205
    %v207 = vsel %vm133, %v178, 0.0
    %v208 = vrot.slane %v207, 4
    %v209 = vadd.f32 %v207, %v208
    %v210 = vrot.slane %v209, 2
    %v211 = vadd.f32 %v209, %v210
    %v212 = vrot.slane %v211, 1
    %v213 = vadd.f32 %v211, %v212
    %v214 = vsel %vm133, %v183, 0.0
    %v215 = vrot.slane %v214, 4
    %v216 = vadd.f32 %v214, %v215
    %v217 = vrot.slane %v216, 2
    %v218 = vadd.f32 %v216, %v217
    %v219 = vrot.slane %v218, 1
    %v220 = vadd.f32 %v218, %v219
    %v221 = vsel %vm133, %v179, 0.0
    %v222 = vrot.slane %v221, 4
    %v223 = vadd.f32 %v221, %v222
    %v224 = vrot.slane %v223, 2
    %v225 = vadd.f32 %v223, %v224
    %v226 = vrot.slane %v225, 1
    %v227 = vadd.f32 %v225, %v226
    %v228 = vmax.f32 %v192, 1e-24
    %v229 = vmax.f32 %v199, 1e-24
    %v230 = vmax.f32 %v206, 1e-24
    %v231 = vmax.f32 %v213, 1e-24
    %v232 = vmax.f32 %v220, 1e-24
    %v233 = vmax.f32 %v227, 1e-24
    %v234 = vrsqrt.pop %v228
    %v235 = vrsqrt.pop %v229
    %v236 = vrsqrt.pop %v230
    %v237 = vrsqrt.pop %v231
    %v238 = vrsqrt.pop %v232
    %v239 = vrsqrt.pop %v233
    %v240 = vmul.f32 %v140, %v234
    %v241 = vmul.f32 %v147, %v235
    %v242 = vmul.f32 %v154, %v236
    %v243 = vmul.f32 %v161, %v237
    %v244 = vmul.f32 %v168, %v238
    %v245 = vmul.f32 %v175, %v239
    %vm252 = vcmask 1041409
    %v253 = vsel %vm252, %v243, %v240
    %v254 = vsel %vm252, %v244, %v241
    %v255 = vsel %vm252, %v245, %v242
    %v259 = vsel %vm96, %v253, 0.0
    %v260 = vsel %vm97, %v254, 0.0
    %v261 = vsel %vm98, %v255, 0.0
    %v262 = vld [vmem:[#allocation2] sm:$0x7]
    %v263 = vmul.f32 %v259, %v259
    %v264 = vmul.f32 %v260, %v260
    %v265 = vmul.f32 %v261, %v261
    %vm266 = vcmask 1041408
    %v267 = vsel %vm266, %v263, 0.0
    %v268 = vrot.slane %v267, 4
    %v269 = vadd.f32 %v267, %v268
    %v270 = vrot.slane %v269, 2
    %v271 = vadd.f32 %v269, %v270
    %v272 = vrot.slane %v271, 1
    %v273 = vadd.f32 %v271, %v272
    %v274 = vsel %vm266, %v264, 0.0
    %v275 = vrot.slane %v274, 4
    %v276 = vadd.f32 %v274, %v275
    %v277 = vrot.slane %v276, 2
    %v278 = vadd.f32 %v276, %v277
    %v279 = vrot.slane %v278, 1
    %v280 = vadd.f32 %v278, %v279
    %v281 = vsel %vm266, %v265, 0.0
    %v282 = vrot.slane %v281, 4
    %v283 = vadd.f32 %v281, %v282
    %v284 = vrot.slane %v283, 2
    %v285 = vadd.f32 %v283, %v284
    %v286 = vrot.slane %v285, 1
    %v287 = vadd.f32 %v285, %v286
    %v291 = vcombine.low %v273, %v280
    %v293 = vunpack.c.l.s4 1966171168
    %v294 = vunpack.c.0.s8 %v293
    %v295 = vlaneseq
    %v296 = vshrl.u32 %v295, 7
    %v297 = vsub.s32 %v294, %v296
    %v298 = vrot.slane %v291, %v297
    %v300 = vunpack.c.l.s4 1966171168
    %v301 = vunpack.c.0.s8 %v300
    %v302 = vlaneseq
    %v303 = vshrl.u32 %v302, 7
    %v304 = vsub.s32 %v301, %v303
    %v305 = vrot.slane %v287, %v304
    %v306 = vcombine.low %v298, %v305
    %v308 = vunpack.c.l.s4 1966171168
    %v309 = vunpack.c.0.s8 %v308
    %v310 = vlaneseq
    %v311 = vshrl.u32 %v310, 7
    %v312 = vsub.s32 %v309, %v311
    %v313 = vrot.slane %v306, %v312
    %v315 = vadd.f32 %v262, %v313
    %v316 = vlaneseq
    %vm317 = vcmp.ge.s32.totalorder %v316, 0
    %vm318 = vcmp.lt.s32.totalorder %v316, 384
    %vm319 = vmand %vm317, %vm318
    %320 = vst.msk [vmem:[#allocation2] sm:$0x7] %vm319, %v315
    %v321 = vld [vmem:[#allocation3] sm:$0x7]
    %v322 = vsel %vm266, %v259, 0.0
    %v323 = vrot.slane %v322, 4
    %v324 = vadd.f32 %v322, %v323
    %v325 = vrot.slane %v324, 2
    %v326 = vadd.f32 %v324, %v325
    %v327 = vrot.slane %v326, 1
    %v328 = vadd.f32 %v326, %v327
    %v329 = vsel %vm266, %v260, 0.0
    %v330 = vrot.slane %v329, 4
    %v331 = vadd.f32 %v329, %v330
    %v332 = vrot.slane %v331, 2
    %v333 = vadd.f32 %v331, %v332
    %v334 = vrot.slane %v333, 1
    %v335 = vadd.f32 %v333, %v334
    %v336 = vsel %vm266, %v261, 0.0
    %v337 = vrot.slane %v336, 4
    %v338 = vadd.f32 %v336, %v337
    %v339 = vrot.slane %v338, 2
    %v340 = vadd.f32 %v338, %v339
    %v341 = vrot.slane %v340, 1
    %v342 = vadd.f32 %v340, %v341
    %v343 = vmul.f32 %v328, %v102
    %v344 = vmul.f32 %v335, %v103
    %v345 = vmul.f32 %v342, %v104
    %v349 = vcombine.low %v343, %v344
    %v351 = vunpack.c.l.s4 1966171168
    %v352 = vunpack.c.0.s8 %v351
    %v353 = vlaneseq
    %v354 = vshrl.u32 %v353, 7
    %v355 = vsub.s32 %v352, %v354
    %v356 = vrot.slane %v349, %v355
    %v358 = vunpack.c.l.s4 1966171168
    %v359 = vunpack.c.0.s8 %v358
    %v360 = vlaneseq
    %v361 = vshrl.u32 %v360, 7
    %v362 = vsub.s32 %v359, %v361
    %v363 = vrot.slane %v345, %v362
    %v364 = vcombine.low %v356, %v363
    %v366 = vunpack.c.l.s4 1966171168
    %v367 = vunpack.c.0.s8 %v366
    %v368 = vlaneseq
    %v369 = vshrl.u32 %v368, 7
    %v370 = vsub.s32 %v367, %v369
    %v371 = vrot.slane %v364, %v370
    %v373 = vadd.f32 %v321, %v371
    %374 = vst.msk [vmem:[#allocation3] sm:$0x7] %vm319, %v373
    %v375 = vld [vmem:[#allocation11] sm:$0x3f]
    %v376 = vld [vmem:[#allocation11 + $0x6] sm:$0x3f]
    %v377 = vunpack.c.l.bf16 %v375
    %v378 = vunpack.c.h.bf16 %v375
    %v379 = vunpack.c.l.bf16 %v376
    %v380 = vunpack.c.h.bf16 %v376
    %382 = vset.pattern.permute.xlu0 0
    %383 = vperm.xlu0 %382, %v89
    %v384 = vpop.permute.xlu0 %383
    %v386 = vunpack.c.l.s4 839922192
    %v387 = vunpack.c.0.s8 %v386
    %v388 = vlaneseq
    %v389 = vshrl.u32 %v388, 7
    %v390 = vsub.s32 %v387, %v389
    %v391 = vrot.slane %v384, %v390
    %v393 = vmul.f32 %v377, %v391
    %v394 = vmul.f32 %v378, %v391
    %v395 = vmul.f32 %v379, %v391
    %v396 = vmul.f32 %v380, %v391
    %v399 = vcombine.high %v393, %v393
    %v400 = vcombine.high %v395, %v395
    %v403 = vsel %vm133, %v393, 0.0
    %v404 = vrot.slane %v403, 4
    %v405 = vadd.f32 %v403, %v404
    %v406 = vrot.slane %v405, 2
    %v407 = vadd.f32 %v405, %v406
    %v408 = vrot.slane %v407, 1
    %v409 = vadd.f32 %v407, %v408
    %v410 = vsel %vm133, %v399, 0.0
    %v411 = vrot.slane %v410, 4
    %v412 = vadd.f32 %v410, %v411
    %v413 = vrot.slane %v412, 2
    %v414 = vadd.f32 %v412, %v413
    %v415 = vrot.slane %v414, 1
    %v416 = vadd.f32 %v414, %v415
    %v417 = vsel %vm133, %v394, 0.0
    %v418 = vrot.slane %v417, 4
    %v419 = vadd.f32 %v417, %v418
    %v420 = vrot.slane %v419, 2
    %v421 = vadd.f32 %v419, %v420
    %v422 = vrot.slane %v421, 1
    %v423 = vadd.f32 %v421, %v422
    %v424 = vsel %vm133, %v395, 0.0
    %v425 = vrot.slane %v424, 4
    %v426 = vadd.f32 %v424, %v425
    %v427 = vrot.slane %v426, 2
    %v428 = vadd.f32 %v426, %v427
    %v429 = vrot.slane %v428, 1
    %v430 = vadd.f32 %v428, %v429
    %v431 = vsel %vm133, %v400, 0.0
    %v432 = vrot.slane %v431, 4
    %v433 = vadd.f32 %v431, %v432
    %v434 = vrot.slane %v433, 2
    %v435 = vadd.f32 %v433, %v434
    %v436 = vrot.slane %v435, 1
    %v437 = vadd.f32 %v435, %v436
    %v438 = vsel %vm133, %v396, 0.0
    %v439 = vrot.slane %v438, 4
    %v440 = vadd.f32 %v438, %v439
    %v441 = vrot.slane %v440, 2
    %v442 = vadd.f32 %v440, %v441
    %v443 = vrot.slane %v442, 1
    %v444 = vadd.f32 %v442, %v443
    %v445 = vmul.f32 %v377, %v377
    %v446 = vmul.f32 %v378, %v378
    %v447 = vmul.f32 %v379, %v379
    %v448 = vmul.f32 %v380, %v380
    %v451 = vcombine.high %v445, %v445
    %v452 = vcombine.high %v447, %v447
    %v455 = vsel %vm133, %v445, 0.0
    %v456 = vrot.slane %v455, 4
    %v457 = vadd.f32 %v455, %v456
    %v458 = vrot.slane %v457, 2
    %v459 = vadd.f32 %v457, %v458
    %v460 = vrot.slane %v459, 1
    %v461 = vadd.f32 %v459, %v460
    %v462 = vsel %vm133, %v451, 0.0
    %v463 = vrot.slane %v462, 4
    %v464 = vadd.f32 %v462, %v463
    %v465 = vrot.slane %v464, 2
    %v466 = vadd.f32 %v464, %v465
    %v467 = vrot.slane %v466, 1
    %v468 = vadd.f32 %v466, %v467
    %v469 = vsel %vm133, %v446, 0.0
    %v470 = vrot.slane %v469, 4
    %v471 = vadd.f32 %v469, %v470
    %v472 = vrot.slane %v471, 2
    %v473 = vadd.f32 %v471, %v472
    %v474 = vrot.slane %v473, 1
    %v475 = vadd.f32 %v473, %v474
    %v476 = vsel %vm133, %v447, 0.0
    %v477 = vrot.slane %v476, 4
    %v478 = vadd.f32 %v476, %v477
    %v479 = vrot.slane %v478, 2
    %v480 = vadd.f32 %v478, %v479
    %v481 = vrot.slane %v480, 1
    %v482 = vadd.f32 %v480, %v481
    %v483 = vsel %vm133, %v452, 0.0
    %v484 = vrot.slane %v483, 4
    %v485 = vadd.f32 %v483, %v484
    %v486 = vrot.slane %v485, 2
    %v487 = vadd.f32 %v485, %v486
    %v488 = vrot.slane %v487, 1
    %v489 = vadd.f32 %v487, %v488
    %v490 = vsel %vm133, %v448, 0.0
    %v491 = vrot.slane %v490, 4
    %v492 = vadd.f32 %v490, %v491
    %v493 = vrot.slane %v492, 2
    %v494 = vadd.f32 %v492, %v493
    %v495 = vrot.slane %v494, 1
    %v496 = vadd.f32 %v494, %v495
    %v497 = vmax.f32 %v461, 1e-24
    %v498 = vmax.f32 %v468, 1e-24
    %v499 = vmax.f32 %v475, 1e-24
    %v500 = vmax.f32 %v482, 1e-24
    %v501 = vmax.f32 %v489, 1e-24
    %v502 = vmax.f32 %v496, 1e-24
    %v503 = vrsqrt.pop %v497
    %v504 = vrsqrt.pop %v498
    %v505 = vrsqrt.pop %v499
    %v506 = vrsqrt.pop %v500
    %v507 = vrsqrt.pop %v501
    %v508 = vrsqrt.pop %v502
    %v509 = vmul.f32 %v409, %v503
    %v510 = vmul.f32 %v416, %v504
    %v511 = vmul.f32 %v423, %v505
    %v512 = vmul.f32 %v430, %v506
    %v513 = vmul.f32 %v437, %v507
    %v514 = vmul.f32 %v444, %v508
    %v521 = vsel %vm252, %v512, %v509
    %v522 = vsel %vm252, %v513, %v510
    %v523 = vsel %vm252, %v514, %v511
    %v527 = vsel %vm96, %v521, 0.0
    %v528 = vsel %vm97, %v522, 0.0
    %v529 = vsel %vm98, %v523, 0.0
    %v530 = vld [vmem:[#allocation4] sm:$0x7]
    %v531 = vmul.f32 %v527, %v527
    %v532 = vmul.f32 %v528, %v528
    %v533 = vmul.f32 %v529, %v529
    %v534 = vsel %vm266, %v531, 0.0
    %v535 = vrot.slane %v534, 4
    %v536 = vadd.f32 %v534, %v535
    %v537 = vrot.slane %v536, 2
    %v538 = vadd.f32 %v536, %v537
    %v539 = vrot.slane %v538, 1
    %v540 = vadd.f32 %v538, %v539
    %v541 = vsel %vm266, %v532, 0.0
    %v542 = vrot.slane %v541, 4
    %v543 = vadd.f32 %v541, %v542
    %v544 = vrot.slane %v543, 2
    %v545 = vadd.f32 %v543, %v544
    %v546 = vrot.slane %v545, 1
    %v547 = vadd.f32 %v545, %v546
    %v548 = vsel %vm266, %v533, 0.0
    %v549 = vrot.slane %v548, 4
    %v550 = vadd.f32 %v548, %v549
    %v551 = vrot.slane %v550, 2
    %v552 = vadd.f32 %v550, %v551
    %v553 = vrot.slane %v552, 1
    %v554 = vadd.f32 %v552, %v553
    %v558 = vcombine.low %v540, %v547
    %v560 = vunpack.c.l.s4 1966171168
    %v561 = vunpack.c.0.s8 %v560
    %v562 = vlaneseq
    %v563 = vshrl.u32 %v562, 7
    %v564 = vsub.s32 %v561, %v563
    %v565 = vrot.slane %v558, %v564
    %v567 = vunpack.c.l.s4 1966171168
    %v568 = vunpack.c.0.s8 %v567
    %v569 = vlaneseq
    %v570 = vshrl.u32 %v569, 7
    %v571 = vsub.s32 %v568, %v570
    %v572 = vrot.slane %v554, %v571
    %v573 = vcombine.low %v565, %v572
    %v575 = vunpack.c.l.s4 1966171168
    %v576 = vunpack.c.0.s8 %v575
    %v577 = vlaneseq
    %v578 = vshrl.u32 %v577, 7
    %v579 = vsub.s32 %v576, %v578
    %v580 = vrot.slane %v573, %v579
    %v582 = vadd.f32 %v530, %v580
    %583 = vst.msk [vmem:[#allocation4] sm:$0x7] %vm319, %v582
    %v584 = vld [vmem:[#allocation5] sm:$0x7]
    %v585 = vsel %vm266, %v527, 0.0
    %v586 = vrot.slane %v585, 4
    %v587 = vadd.f32 %v585, %v586
    %v588 = vrot.slane %v587, 2
    %v589 = vadd.f32 %v587, %v588
    %v590 = vrot.slane %v589, 1
    %v591 = vadd.f32 %v589, %v590
    %v592 = vsel %vm266, %v528, 0.0
    %v593 = vrot.slane %v592, 4
    %v594 = vadd.f32 %v592, %v593
    %v595 = vrot.slane %v594, 2
    %v596 = vadd.f32 %v594, %v595
    %v597 = vrot.slane %v596, 1
    %v598 = vadd.f32 %v596, %v597
    %v599 = vsel %vm266, %v529, 0.0
    %v600 = vrot.slane %v599, 4
    %v601 = vadd.f32 %v599, %v600
    %v602 = vrot.slane %v601, 2
    %v603 = vadd.f32 %v601, %v602
    %v604 = vrot.slane %v603, 1
    %v605 = vadd.f32 %v603, %v604
    %v606 = vmul.f32 %v591, %v102
    %v607 = vmul.f32 %v598, %v103
    %v608 = vmul.f32 %v605, %v104
    %v612 = vcombine.low %v606, %v607
    %v614 = vunpack.c.l.s4 1966171168
    %v615 = vunpack.c.0.s8 %v614
    %v616 = vlaneseq
    %v617 = vshrl.u32 %v616, 7
    %v618 = vsub.s32 %v615, %v617
    %v619 = vrot.slane %v612, %v618
    %v621 = vunpack.c.l.s4 1966171168
    %v622 = vunpack.c.0.s8 %v621
    %v623 = vlaneseq
    %v624 = vshrl.u32 %v623, 7
    %v625 = vsub.s32 %v622, %v624
    %v626 = vrot.slane %v608, %v625
    %v627 = vcombine.high %v619, %v626
    %v629 = vunpack.c.l.s4 1966171168
    %v630 = vunpack.c.0.s8 %v629
    %v631 = vlaneseq
    %v632 = vshrl.u32 %v631, 7
    %v633 = vsub.s32 %v630, %v632
    %v634 = vrot.slane %v627, %v633
    %v636 = vadd.f32 %v584, %v634
    %637 = vst.msk [vmem:[#allocation5] sm:$0x7] %vm319, %v636
    %v638 = vld [vmem:[#allocation13] sm:$0x3f]
    %v639 = vld [vmem:[#allocation13 + $0x6] sm:$0x3f]
    %v640 = vunpack.c.l.bf16 %v638
    %v641 = vunpack.c.h.bf16 %v638
    %v642 = vunpack.c.l.bf16 %v639
    %v643 = vunpack.c.h.bf16 %v639
    %645 = vset.pattern.permute.xlu0 0
    %646 = vperm.xlu0 %645, %v90
    %v647 = vpop.permute.xlu0 %646
    %v649 = vunpack.c.l.s4 839922192
    %v650 = vunpack.c.0.s8 %v649
    %v651 = vlaneseq
    %v652 = vshrl.u32 %v651, 7
    %v653 = vsub.s32 %v650, %v652
    %v654 = vrot.slane %v647, %v653
    %v656 = vmul.f32 %v640, %v654
    %v657 = vmul.f32 %v641, %v654
    %v658 = vmul.f32 %v642, %v654
    %v659 = vmul.f32 %v643, %v654
    %v662 = vcombine.high %v656, %v656
    %v663 = vcombine.high %v658, %v658
    %v666 = vsel %vm133, %v656, 0.0
    %v667 = vrot.slane %v666, 4
    %v668 = vadd.f32 %v666, %v667
    %v669 = vrot.slane %v668, 2
    %v670 = vadd.f32 %v668, %v669
    %v671 = vrot.slane %v670, 1
    %v672 = vadd.f32 %v670, %v671
    %v673 = vsel %vm133, %v662, 0.0
    %v674 = vrot.slane %v673, 4
    %v675 = vadd.f32 %v673, %v674
    %v676 = vrot.slane %v675, 2
    %v677 = vadd.f32 %v675, %v676
    %v678 = vrot.slane %v677, 1
    %v679 = vadd.f32 %v677, %v678
    %v680 = vsel %vm133, %v657, 0.0
    %v681 = vrot.slane %v680, 4
    %v682 = vadd.f32 %v680, %v681
    %v683 = vrot.slane %v682, 2
    %v684 = vadd.f32 %v682, %v683
    %v685 = vrot.slane %v684, 1
    %v686 = vadd.f32 %v684, %v685
    %v687 = vsel %vm133, %v658, 0.0
    %v688 = vrot.slane %v687, 4
    %v689 = vadd.f32 %v687, %v688
    %v690 = vrot.slane %v689, 2
    %v691 = vadd.f32 %v689, %v690
    %v692 = vrot.slane %v691, 1
    %v693 = vadd.f32 %v691, %v692
    %v694 = vsel %vm133, %v663, 0.0
    %v695 = vrot.slane %v694, 4
    %v696 = vadd.f32 %v694, %v695
    %v697 = vrot.slane %v696, 2
    %v698 = vadd.f32 %v696, %v697
    %v699 = vrot.slane %v698, 1
    %v700 = vadd.f32 %v698, %v699
    %v701 = vsel %vm133, %v659, 0.0
    %v702 = vrot.slane %v701, 4
    %v703 = vadd.f32 %v701, %v702
    %v704 = vrot.slane %v703, 2
    %v705 = vadd.f32 %v703, %v704
    %v706 = vrot.slane %v705, 1
    %v707 = vadd.f32 %v705, %v706
    %v708 = vmul.f32 %v640, %v640
    %v709 = vmul.f32 %v641, %v641
    %v710 = vmul.f32 %v642, %v642
    %v711 = vmul.f32 %v643, %v643
    %v714 = vcombine.high %v708, %v708
    %v715 = vcombine.high %v710, %v710
    %v718 = vsel %vm133, %v708, 0.0
    %v719 = vrot.slane %v718, 4
    %v720 = vadd.f32 %v718, %v719
    %v721 = vrot.slane %v720, 2
    %v722 = vadd.f32 %v720, %v721
    %v723 = vrot.slane %v722, 1
    %v724 = vadd.f32 %v722, %v723
    %v725 = vsel %vm133, %v714, 0.0
    %v726 = vrot.slane %v725, 4
    %v727 = vadd.f32 %v725, %v726
    %v728 = vrot.slane %v727, 2
    %v729 = vadd.f32 %v727, %v728
    %v730 = vrot.slane %v729, 1
    %v731 = vadd.f32 %v729, %v730
    %v732 = vsel %vm133, %v709, 0.0
    %v733 = vrot.slane %v732, 4
    %v734 = vadd.f32 %v732, %v733
    %v735 = vrot.slane %v734, 2
    %v736 = vadd.f32 %v734, %v735
    %v737 = vrot.slane %v736, 1
    %v738 = vadd.f32 %v736, %v737
    %v739 = vsel %vm133, %v710, 0.0
    %v740 = vrot.slane %v739, 4
    %v741 = vadd.f32 %v739, %v740
    %v742 = vrot.slane %v741, 2
    %v743 = vadd.f32 %v741, %v742
    %v744 = vrot.slane %v743, 1
    %v745 = vadd.f32 %v743, %v744
    %v746 = vsel %vm133, %v715, 0.0
    %v747 = vrot.slane %v746, 4
    %v748 = vadd.f32 %v746, %v747
    %v749 = vrot.slane %v748, 2
    %v750 = vadd.f32 %v748, %v749
    %v751 = vrot.slane %v750, 1
    %v752 = vadd.f32 %v750, %v751
    %v753 = vsel %vm133, %v711, 0.0
    %v754 = vrot.slane %v753, 4
    %v755 = vadd.f32 %v753, %v754
    %v756 = vrot.slane %v755, 2
    %v757 = vadd.f32 %v755, %v756
    %v758 = vrot.slane %v757, 1
    %v759 = vadd.f32 %v757, %v758
    %v760 = vmax.f32 %v724, 1e-24
    %v761 = vmax.f32 %v731, 1e-24
    %v762 = vmax.f32 %v738, 1e-24
    %v763 = vmax.f32 %v745, 1e-24
    %v764 = vmax.f32 %v752, 1e-24
    %v765 = vmax.f32 %v759, 1e-24
    %v766 = vrsqrt.pop %v760
    %v767 = vrsqrt.pop %v761
    %v768 = vrsqrt.pop %v762
    %v769 = vrsqrt.pop %v763
    %v770 = vrsqrt.pop %v764
    %v771 = vrsqrt.pop %v765
    %v772 = vmul.f32 %v672, %v766
    %v773 = vmul.f32 %v679, %v767
    %v774 = vmul.f32 %v686, %v768
    %v775 = vmul.f32 %v693, %v769
    %v776 = vmul.f32 %v700, %v770
    %v777 = vmul.f32 %v707, %v771
    %v784 = vsel %vm252, %v775, %v772
    %v785 = vsel %vm252, %v776, %v773
    %v786 = vsel %vm252, %v777, %v774
    %v790 = vsel %vm96, %v784, 0.0
    %v791 = vsel %vm97, %v785, 0.0
    %v792 = vsel %vm98, %v786, 0.0
    %v793 = vld [vmem:[#allocation6] sm:$0x7]
    %v794 = vmul.f32 %v790, %v790
    %v795 = vmul.f32 %v791, %v791
    %v796 = vmul.f32 %v792, %v792
    %v797 = vsel %vm266, %v794, 0.0
    %v798 = vrot.slane %v797, 4
    %v799 = vadd.f32 %v797, %v798
    %v800 = vrot.slane %v799, 2
    %v801 = vadd.f32 %v799, %v800
    %v802 = vrot.slane %v801, 1
    %v803 = vadd.f32 %v801, %v802
    %v804 = vsel %vm266, %v795, 0.0
    %v805 = vrot.slane %v804, 4
    %v806 = vadd.f32 %v804, %v805
    %v807 = vrot.slane %v806, 2
    %v808 = vadd.f32 %v806, %v807
    %v809 = vrot.slane %v808, 1
    %v810 = vadd.f32 %v808, %v809
    %v811 = vsel %vm266, %v796, 0.0
    %v812 = vrot.slane %v811, 4
    %v813 = vadd.f32 %v811, %v812
    %v814 = vrot.slane %v813, 2
    %v815 = vadd.f32 %v813, %v814
    %v816 = vrot.slane %v815, 1
    %v817 = vadd.f32 %v815, %v816
    %v821 = vcombine.low %v803, %v810
    %v823 = vunpack.c.l.s4 1966171168
    %v824 = vunpack.c.0.s8 %v823
    %v825 = vlaneseq
    %v826 = vshrl.u32 %v825, 7
    %v827 = vsub.s32 %v824, %v826
    %v828 = vrot.slane %v821, %v827
    %v830 = vunpack.c.l.s4 1966171168
    %v831 = vunpack.c.0.s8 %v830
    %v832 = vlaneseq
    %v833 = vshrl.u32 %v832, 7
    %v834 = vsub.s32 %v831, %v833
    %v835 = vrot.slane %v817, %v834
    %v836 = vcombine.low %v828, %v835
    %v838 = vunpack.c.l.s4 1966171168
    %v839 = vunpack.c.0.s8 %v838
    %v840 = vlaneseq
    %v841 = vshrl.u32 %v840, 7
    %v842 = vsub.s32 %v839, %v841
    %v843 = vrot.slane %v836, %v842
    %v845 = vadd.f32 %v793, %v843
    %846 = vst.msk [vmem:[#allocation6] sm:$0x7] %vm319, %v845
    %v847 = vld [vmem:[#allocation7] sm:$0x7]
    %v848 = vsel %vm266, %v790, 0.0
    %v849 = vrot.slane %v848, 4
    %v850 = vadd.f32 %v848, %v849
    %v851 = vrot.slane %v850, 2
    %v852 = vadd.f32 %v850, %v851
    %v853 = vrot.slane %v852, 1
    %v854 = vadd.f32 %v852, %v853
    %v855 = vsel %vm266, %v791, 0.0
    %v856 = vrot.slane %v855, 4
    %v857 = vadd.f32 %v855, %v856
    %v858 = vrot.slane %v857, 2
    %v859 = vadd.f32 %v857, %v858
    %v860 = vrot.slane %v859, 1
    %v861 = vadd.f32 %v859, %v860
    %v862 = vsel %vm266, %v792, 0.0
    %v863 = vrot.slane %v862, 4
    %v864 = vadd.f32 %v862, %v863
    %v865 = vrot.slane %v864, 2
    %v866 = vadd.f32 %v864, %v865
    %v867 = vrot.slane %v866, 1
    %v868 = vadd.f32 %v866, %v867
    %v869 = vmul.f32 %v854, %v102
    %v870 = vmul.f32 %v861, %v103
    %v871 = vmul.f32 %v868, %v104
    %v875 = vcombine.low %v869, %v870
    %v877 = vunpack.c.l.s4 1966171168
    %v878 = vunpack.c.0.s8 %v877
    %v879 = vlaneseq
    %v880 = vshrl.u32 %v879, 7
    %v881 = vsub.s32 %v878, %v880
    %v882 = vrot.slane %v875, %v881
    %v884 = vunpack.c.l.s4 1966171168
    %v885 = vunpack.c.0.s8 %v884
    %v886 = vlaneseq
    %v887 = vshrl.u32 %v886, 7
    %v888 = vsub.s32 %v885, %v887
    %v889 = vrot.slane %v871, %v888
    %v890 = vcombine.low %v882, %v889
    %v892 = vunpack.c.l.s4 1966171168
    %v893 = vunpack.c.0.s8 %v892
    %v894 = vlaneseq
    %v895 = vshrl.u32 %v894, 7
    %v896 = vsub.s32 %v893, %v895
    %v897 = vrot.slane %v890, %v896
    %v898 = vcombine.high %v897, %v897
    %v900 = vadd.f32 %v847, %v898
    %901 = vst.msk [vmem:[#allocation7] sm:$0x7] %vm319, %v900
    // Predicated region
    $region38: #{tpu_custom_call.1} parent=1 // pred_check
      %p902 = pneg %p62
    $region39: #{tpu_custom_call.1} parent=1 // pred_check_branch
      %904 = sbr.rel (%p902) target = $region41
    $region40: #{tpu_custom_call.1} parent=1 // pred_region
      %v905 = vld [vmem:[#allocation2] sm:$0x7]
      %v907 = vlaneseq
      %v908 = vshrl.u32 %v907, 7
      %v909 = vsub.s32 0, %v908
      %v910 = vrot.slane %v905, %v909
      %v911 = vlaneseq
      %v912 = vshrl.u32 %v911, 7
      %v913 = vsub.s32 1, %v912
      %v914 = vrot.slane %v905, %v913
      %v915 = vlaneseq
      %v916 = vshrl.u32 %v915, 7
      %v917 = vsub.s32 2, %v916
      %v918 = vrot.slane %v905, %v917
      %vm922 = vcmask 1040384
      %v923 = vsel %vm922, %v910, 0.0
      %v924 = vsel %vm922, %v914, 0.0
      %v925 = vadd.f32 %v923, %v924
      %v926 = vsel %vm922, %v918, 0.0
      %v927 = vadd.f32 %v925, %v926
      %928 = vadd.xlane.f32.xlu0 %v927
      %v929 = vpop.xlane.xlu0 %928
      %v930 = vrot.slane %v929, 4
      %v931 = vadd.f32 %v929, %v930
      %v932 = vrot.slane %v931, 2
      %v933 = vadd.f32 %v931, %v932
      %v934 = vrot.slane %v933, 1
      %v935 = vadd.f32 %v933, %v934
      %s936 = vtos %v935
      %v937 = vld [vmem:[#allocation3] sm:$0x7]
      %v939 = vlaneseq
      %v940 = vshrl.u32 %v939, 7
      %v941 = vsub.s32 0, %v940
      %v942 = vrot.slane %v937, %v941
      %v943 = vlaneseq
      %v944 = vshrl.u32 %v943, 7
      %v945 = vsub.s32 1, %v944
      %v946 = vrot.slane %v937, %v945
      %v947 = vlaneseq
      %v948 = vshrl.u32 %v947, 7
      %v949 = vsub.s32 2, %v948
      %v950 = vrot.slane %v937, %v949
      %v954 = vsel %vm922, %v942, 0.0
      %v955 = vsel %vm922, %v946, 0.0
      %v956 = vadd.f32 %v954, %v955
      %v957 = vsel %vm922, %v950, 0.0
      %v958 = vadd.f32 %v956, %v957
      %959 = vadd.xlane.f32.xlu0 %v958
      %v960 = vpop.xlane.xlu0 %959
      %v961 = vrot.slane %v960, 4
      %v962 = vadd.f32 %v960, %v961
      %v963 = vrot.slane %v962, 2
      %v964 = vadd.f32 %v962, %v963
      %v965 = vrot.slane %v964, 1
      %v966 = vadd.f32 %v964, %v965
      %s967 = vtos %v966
      %s968 = smul.f32 %s936, 2.0
      %s969 = smul.f32 %s967, 2.0
      %s970 = ssub.f32 %s968, %s969
      %v971 = vrcp.pop 1296.0
      %s972 = vtos %v971
      %s973 = smul.f32 %s970, %s972
      %s974 = sadd.f32 %s973, 1.0
      %s975 = scalar_lea.smem [#allocation14], 0
      %976 = sst [smem:[%s975]] %s974
      %v977 = vld [vmem:[#allocation4] sm:$0x7]
      %v979 = vlaneseq
      %v980 = vshrl.u32 %v979, 7
      %v981 = vsub.s32 0, %v980
      %v982 = vrot.slane %v977, %v981
      %v983 = vlaneseq
      %v984 = vshrl.u32 %v983, 7
      %v985 = vsub.s32 1, %v984
      %v986 = vrot.slane %v977, %v985
      %v987 = vlaneseq
      %v988 = vshrl.u32 %v987, 7
      %v989 = vsub.s32 2, %v988
      %v990 = vrot.slane %v977, %v989
      %v994 = vsel %vm922, %v982, 0.0
      %v995 = vsel %vm922, %v986, 0.0
      %v996 = vadd.f32 %v994, %v995
      %v997 = vsel %vm922, %v990, 0.0
      %v998 = vadd.f32 %v996, %v997
      %999 = vadd.xlane.f32.xlu0 %v998
      %v1000 = vpop.xlane.xlu0 %999
      %v1001 = vrot.slane %v1000, 4
      %v1002 = vadd.f32 %v1000, %v1001
      %v1003 = vrot.slane %v1002, 2
      %v1004 = vadd.f32 %v1002, %v1003
      %v1005 = vrot.slane %v1004, 1
      %v1006 = vadd.f32 %v1004, %v1005
      %s1007 = vtos %v1006
      %v1008 = vld [vmem:[#allocation5] sm:$0x7]
      %v1010 = vlaneseq
      %v1011 = vshrl.u32 %v1010, 7
      %v1012 = vsub.s32 0, %v1011
      %v1013 = vrot.slane %v1008, %v1012
      %v1014 = vlaneseq
      %v1015 = vshrl.u32 %v1014, 7
      %v1016 = vsub.s32 1, %v1015
      %v1017 = vrot.slane %v1008, %v1016
      %v1018 = vlaneseq
      %v1019 = vshrl.u32 %v1018, 7
      %v1020 = vsub.s32 2, %v1019
      %v1021 = vrot.slane %v1008, %v1020
      %v1025 = vsel %vm922, %v1013, 0.0
      %v1026 = vsel %vm922, %v1017, 0.0
      %v1027 = vadd.f32 %v1025, %v1026
      %v1028 = vsel %vm922, %v1021, 0.0
      %v1029 = vadd.f32 %v1027, %v1028
      %1030 = vadd.xlane.f32.xlu0 %v1029
      %v1031 = vpop.xlane.xlu0 %1030
      %v1032 = vrot.slane %v1031, 4
      %v1033 = vadd.f32 %v1031, %v1032
      %v1034 = vrot.slane %v1033, 2
      %v1035 = vadd.f32 %v1033, %v1034
      %v1036 = vrot.slane %v1035, 1
      %v1037 = vadd.f32 %v1035, %v1036
      %s1038 = vtos %v1037
      %s1039 = smul.f32 %s1007, 2.0
      %s1040 = smul.f32 %s1038, 2.0
      %s1041 = ssub.f32 %s1039, %s1040
      %v1042 = vrcp.pop 1296.0
      %s1043 = vtos %v1042
      %s1044 = smul.f32 %s1041, %s1043
      %s1045 = sadd.f32 %s1044, 1.0
      %s1046 = scalar_lea.smem [#allocation14], 1
      %1047 = sst [smem:[%s1046]] %s1045
      %v1048 = vld [vmem:[#allocation6] sm:$0x7]
      %v1050 = vlaneseq
      %v1051 = vshrl.u32 %v1050, 7
      %v1052 = vsub.s32 0, %v1051
      %v1053 = vrot.slane %v1048, %v1052
      %v1054 = vlaneseq
      %v1055 = vshrl.u32 %v1054, 7
      %v1056 = vsub.s32 1, %v1055
      %v1057 = vrot.slane %v1048, %v1056
      %v1058 = vlaneseq
      %v1059 = vshrl.u32 %v1058, 7
      %v1060 = vsub.s32 2, %v1059
      %v1061 = vrot.slane %v1048, %v1060
      %v1065 = vsel %vm922, %v1053, 0.0
      %v1066 = vsel %vm922, %v1057, 0.0
      %v1067 = vadd.f32 %v1065, %v1066
      %v1068 = vsel %vm922, %v1061, 0.0
      %v1069 = vadd.f32 %v1067, %v1068
      %1070 = vadd.xlane.f32.xlu0 %v1069
      %v1071 = vpop.xlane.xlu0 %1070
      %v1072 = vrot.slane %v1071, 4
      %v1073 = vadd.f32 %v1071, %v1072
      %v1074 = vrot.slane %v1073, 2
      %v1075 = vadd.f32 %v1073, %v1074
      %v1076 = vrot.slane %v1075, 1
      %v1077 = vadd.f32 %v1075, %v1076
      %s1078 = vtos %v1077
      %v1079 = vld [vmem:[#allocation7] sm:$0x7]
      %v1081 = vlaneseq
      %v1082 = vshrl.u32 %v1081, 7
      %v1083 = vsub.s32 0, %v1082
      %v1084 = vrot.slane %v1079, %v1083
      %v1085 = vlaneseq
      %v1086 = vshrl.u32 %v1085, 7
      %v1087 = vsub.s32 1, %v1086
      %v1088 = vrot.slane %v1079, %v1087
      %v1089 = vlaneseq
      %v1090 = vshrl.u32 %v1089, 7
      %v1091 = vsub.s32 2, %v1090
      %v1092 = vrot.slane %v1079, %v1091
      %v1096 = vsel %vm922, %v1084, 0.0
      %v1097 = vsel %vm922, %v1088, 0.0
      %v1098 = vadd.f32 %v1096, %v1097
      %v1099 = vsel %vm922, %v1092, 0.0
      %v1100 = vadd.f32 %v1098, %v1099
      %1101 = vadd.xlane.f32.xlu0 %v1100
      %v1102 = vpop.xlane.xlu0 %1101
      %v1103 = vrot.slane %v1102, 4
      %v1104 = vadd.f32 %v1102, %v1103
      %v1105 = vrot.slane %v1104, 2
      %v1106 = vadd.f32 %v1104, %v1105
      %v1107 = vrot.slane %v1106, 1
      %v1108 = vadd.f32 %v1106, %v1107
      %s1109 = vtos %v1108
      %s1110 = smul.f32 %s1078, 2.0
      %s1111 = smul.f32 %s1109, 2.0
      %s1112 = ssub.f32 %s1110, %s1111
      %v1113 = vrcp.pop 1296.0
      %s1114 = vtos %v1113
      %s1115 = smul.f32 %s1112, %s1114
      %s1116 = sadd.f32 %s1115, 1.0
      %s1117 = scalar_lea.smem [#allocation14], 2
      %1118 = sst [smem:[%s1117]] %s1116
    $region41: #{tpu_custom_call.1} parent=1 // pred_fallthru
      _
    // Predicated region
    $region42: #{tpu_custom_call.1} parent=1 // pred_check
      _
    $region43: #{tpu_custom_call.1} parent=1 // pred_check_branch
      %1120 = sbr.rel (0) target = $region45
    $region44: #{tpu_custom_call.1} parent=1 // pred_region
      %s1122 = ssub.s32 16, 16
      %1123 = vsyncadd [#allocation10], %s1122
      %1126 = dma.smem_to_hbm [#allocation14], 16, %s5, [#allocation10]
    $region45: #{tpu_custom_call.1} parent=1 // pred_fallthru
      _
    // Predicated region
    $region46: #{tpu_custom_call.1} parent=1 // pred_check
      _
    $region47: #{tpu_custom_call.1} parent=1 // pred_check_branch
      %1128 = sbr.rel (0) target = $region49
    $region48: #{tpu_custom_call.1} parent=1 // pred_region
      %1129 = dma.done [#allocation10], 16
    $region49: #{tpu_custom_call.1} parent=1 // pred_fallthru
      _
    %1130 = sfence
    %1131 = vsyncpa [#allocation9], 1
    %1132 = vsyncpa [#allocation12], 1
    %1133 = vsyncpa [#allocation10], 1

</llo_original>
